<compile_context>
chip_gen: v7x
topology: tpu7x:2x2x1
jax: 0.10.0
libtpu: 0.0.40
codegen_flags: <defaults>
</compile_context>

<pallas_src>
import jax
import jax.numpy as jnp
from jax.experimental import pallas as pl
from jax.experimental.pallas import tpu as pltpu


def _concat_dma_kernel(*refs):
    """Issue one HBM->HBM DMA per input into its channel slice of the output.

    refs = (in_ref_0, ..., in_ref_{K-1}, out_ref, sem):
      in_ref_i : HBM ref, shape (N, C_i * HW)
      out_ref  : HBM ref, shape (N, sum(C_i) * HW)
      sem      : DMA semaphore array of shape (K,)

    All copies are started first (so the DMA engines overlap them), then all
    are waited on before the kernel returns.
    """
    *in_refs, out_ref, sem = refs
    copies = []
    off = 0
    for i, r in enumerate(in_refs):
        width = r.shape[1]  # static: C_i * HW
        cp = pltpu.make_async_copy(
            r, out_ref.at[:, off:off + width], sem.at[i])
        cp.start()
        copies.append(cp)
        off += width
    for cp in copies:
        cp.wait()


def feature_concat(layers, outputs):
    """JAX/Pallas equivalent of FeatureConcat(layers).forward(x, outputs).

    `outputs` is a list of NCHW arrays; concatenation is along axis 1
    (channels).  Single-layer case is a passthrough, matching the PyTorch
    module (`self.multiple == False`).
    """
    selected = [outputs[i] for i in layers]
    if len(selected) == 1:
        return selected[0]

    first = selected[0]
    if first.ndim != 4:
        raise ValueError(f"Expected NCHW tensors, got shape {first.shape}")
    n, _, h, w = first.shape
    dtype = first.dtype
    for t in selected:
        if t.ndim != 4 or t.shape[0] != n or t.shape[2] != h or t.shape[3] != w:
            raise ValueError(
                f"FeatureConcat: incompatible shapes {first.shape} vs {t.shape}"
            )
        if t.dtype != dtype:
            raise ValueError(
                f"FeatureConcat: incompatible dtypes {dtype} vs {t.dtype}"
            )

    hw = h * w
    c_sizes = [t.shape[1] for t in selected]
    c_total = sum(c_sizes)

    # Row-major flatten -> free reshape; every destination channel slice
    # becomes one contiguous run of C_i*HW elements per batch row, and all
    # offsets are multiples of HW (lane-aligned for HW >= 128).
    flat_inputs = [t.reshape(n, c * hw) for t, c in zip(selected, c_sizes)]

    out_flat = pl.pallas_call(
        _concat_dma_kernel,
        out_shape=jax.ShapeDtypeStruct((n, c_total * hw), dtype),
        in_specs=[pl.BlockSpec(memory_space=pl.ANY) for _ in flat_inputs],
        out_specs=pl.BlockSpec(memory_space=pl.ANY),
        scratch_shapes=[pltpu.SemaphoreType.DMA((len(flat_inputs),))],
        compiler_params=pltpu.CompilerParams(has_side_effects=True),
    )(*flat_inputs)

    return out_flat.reshape(n, c_total, h, w)


if __name__ == "__main__":
    key = jax.random.PRNGKey(0)
    k0, k1, k2 = jax.random.split(key, 3)

    # Small NCHW feature maps as would appear in a detection backbone.
    n, h, w = 2, 16, 16
    outputs = [
        jax.random.normal(k0, (n, 4, h, w), dtype=jnp.float32),
        jax.random.normal(k1, (n, 6, h, w), dtype=jnp.float32),
        jax.random.normal(k2, (n, 8, h, w), dtype=jnp.float32),
    ]

    # Multi-layer case (self.multiple == True): concat channels of two maps.
    layers = [-1, -3]
    result = feature_concat(layers, outputs)
    jax.block_until_ready(result)

    ref = jnp.concatenate([outputs[i] for i in layers], axis=1)
    assert result.shape == ref.shape, (result.shape, ref.shape)
    assert result.dtype == ref.dtype
    assert jnp.array_equal(result, ref), "Pallas concat mismatch vs reference"

    # Three-way concat exercises multiple overlapping DMAs.
    layers3 = [0, 1, 2]
    result3 = feature_concat(layers3, outputs)
    jax.block_until_ready(result3)
    ref3 = jnp.concatenate([outputs[i] for i in layers3], axis=1)
    assert jnp.array_equal(result3, ref3), "Pallas 3-way concat mismatch"

    # Single-layer case (self.multiple == False): passthrough.
    single = feature_concat([-2], outputs)
    jax.block_until_ready(single)
    assert jnp.array_equal(single, outputs[-2])

    print("KERNEL_OK")
</pallas_src>

<mosaic_0001>
module attributes {stable_mosaic.version = 11 : i64} {
  func.func @_concat_dma_kernel(%arg0: memref<2x2048xf32, #tpu.memory_space<any>>, %arg1: memref<2x1024xf32, #tpu.memory_space<any>>, %arg2: memref<2x3072xf32, #tpu.memory_space<any>>, %arg3: memref<2x!tpu.dma_semaphore, #tpu.memory_space<semaphore_mem>>) attributes {dimension_semantics = [], scalar_prefetch = 0 : i64, scratch_operands = 1 : i64, tpu.core_type = #tpu.core_type<tc>} {
    %c0_i32 = arith.constant 0 : i32
    %c0_i32_0 = arith.constant 0 : i32
    %c0_i32_1 = arith.constant 0 : i32
    %0 = tpu.memref_slice %arg2[%c0_i32_0, %c0_i32_1] : memref<2x3072xf32, #tpu.memory_space<any>> -> memref<2x2048xf32, #tpu.memory_space<any>>
    %1 = tpu.memref_slice %arg3[%c0_i32] : memref<2x!tpu.dma_semaphore, #tpu.memory_space<semaphore_mem>> -> memref<1x!tpu.dma_semaphore, #tpu.memory_space<semaphore_mem>>
    %2 = tpu.memref_squeeze %1 : memref<1x!tpu.dma_semaphore, #tpu.memory_space<semaphore_mem>> -> memref<!tpu.dma_semaphore, #tpu.memory_space<semaphore_mem>>
    tpu.enqueue_dma source(%arg0 : memref<2x2048xf32, #tpu.memory_space<any>>) target(%0 : memref<2x2048xf32, #tpu.memory_space<any>>) target_semaphore(%2 : memref<!tpu.dma_semaphore, #tpu.memory_space<semaphore_mem>>)
    %c1_i32 = arith.constant 1 : i32
    %c0_i32_2 = arith.constant 0 : i32
    %c2048_i32 = arith.constant 2048 : i32
    %3 = tpu.memref_slice %arg2[%c0_i32_2, %c2048_i32] : memref<2x3072xf32, #tpu.memory_space<any>> -> memref<2x1024xf32, #tpu.memory_space<any>>
    %4 = tpu.memref_slice %arg3[%c1_i32] : memref<2x!tpu.dma_semaphore, #tpu.memory_space<semaphore_mem>> -> memref<1x!tpu.dma_semaphore, #tpu.memory_space<semaphore_mem>>
    %5 = tpu.memref_squeeze %4 : memref<1x!tpu.dma_semaphore, #tpu.memory_space<semaphore_mem>> -> memref<!tpu.dma_semaphore, #tpu.memory_space<semaphore_mem>>
    tpu.enqueue_dma source(%arg1 : memref<2x1024xf32, #tpu.memory_space<any>>) target(%3 : memref<2x1024xf32, #tpu.memory_space<any>>) target_semaphore(%5 : memref<!tpu.dma_semaphore, #tpu.memory_space<semaphore_mem>>)
    %c0_i32_3 = arith.constant 0 : i32
    %c0_i32_4 = arith.constant 0 : i32
    %c0_i32_5 = arith.constant 0 : i32
    %6 = tpu.memref_slice %arg2[%c0_i32_4, %c0_i32_5] : memref<2x3072xf32, #tpu.memory_space<any>> -> memref<2x2048xf32, #tpu.memory_space<any>>
    %7 = tpu.memref_slice %arg3[%c0_i32_3] : memref<2x!tpu.dma_semaphore, #tpu.memory_space<semaphore_mem>> -> memref<1x!tpu.dma_semaphore, #tpu.memory_space<semaphore_mem>>
    %8 = tpu.memref_squeeze %7 : memref<1x!tpu.dma_semaphore, #tpu.memory_space<semaphore_mem>> -> memref<!tpu.dma_semaphore, #tpu.memory_space<semaphore_mem>>
    tpu.wait_dma2 semaphore(%8 : memref<!tpu.dma_semaphore, #tpu.memory_space<semaphore_mem>>) src(%arg0 : memref<2x2048xf32, #tpu.memory_space<any>>) dst(%6 : memref<2x2048xf32, #tpu.memory_space<any>>)
    %c1_i32_6 = arith.constant 1 : i32
    %c0_i32_7 = arith.constant 0 : i32
    %c2048_i32_8 = arith.constant 2048 : i32
    %9 = tpu.memref_slice %arg2[%c0_i32_7, %c2048_i32_8] : memref<2x3072xf32, #tpu.memory_space<any>> -> memref<2x1024xf32, #tpu.memory_space<any>>
    %10 = tpu.memref_slice %arg3[%c1_i32_6] : memref<2x!tpu.dma_semaphore, #tpu.memory_space<semaphore_mem>> -> memref<1x!tpu.dma_semaphore, #tpu.memory_space<semaphore_mem>>
    %11 = tpu.memref_squeeze %10 : memref<1x!tpu.dma_semaphore, #tpu.memory_space<semaphore_mem>> -> memref<!tpu.dma_semaphore, #tpu.memory_space<semaphore_mem>>
    tpu.wait_dma2 semaphore(%11 : memref<!tpu.dma_semaphore, #tpu.memory_space<semaphore_mem>>) src(%arg1 : memref<2x1024xf32, #tpu.memory_space<any>>) dst(%9 : memref<2x1024xf32, #tpu.memory_space<any>>)
    return
  }
}

</mosaic_0001>

<llo_original>
// kernel: tpu_custom_call.1
$region0: #{tpu_custom_call.1}
  #allocation0 [shape = 'u32[]', space=smem, size = 0x4, offset = 0x4, fixed_abs, tag = 'smem constant byte address 0x4 - core index']
  #allocation1 [shape = 'u32[144,128]{1,0:T(1,128)}', space=vmem, size = 0x12000, scoped, tag = 'internal scratch']
  #allocation2 [shape = 's32[2]{0}', space=sflag, size = 0x8, scoped, tag = 'scratch operand']
  #allocation3 [shape = 's32[]', space=sflag, size = 0x4, offset = 0, fixed_abs, tag = 'sflag constant byte address 0x0 - dummy sync flag']
  #allocation4 [shape = 'u32[0]{0}', space=smem, size = 0, offset = 0, fixed_abs, tag = 'smem constant byte address 0x0 - null']
  #allocation5 [shape = 's32[]', space=sflag, size = 0x4, offset = 0, fixed_abs, tag = 'sflag constant byte address 0x0 - dummy sync flag']
  #allocation6 [shape = 'u32[0]{0}', space=smem, size = 0, offset = 0, fixed_abs, tag = 'smem constant byte address 0x0 - null']
  %s0 = inlined_call_operand.hbm [shape: f32[2,2048], index: 0, kind: input, shape index: {}]
  %s1 = inlined_call_operand.hbm [shape: f32[2,1024], index: 1, kind: input, shape index: {}]
  %s2 = inlined_call_operand.hbm [shape: f32[2,3072], index: 2, kind: output, shape index: {}]
  %s3 = sld [smem:[#allocation0]]
  $region2: #{tpu_custom_call.1} parent=0
    _
  %s5 = ssub.s32 1, %s3
  %s6 = scalar_select 0, %s5, %s3
  %s8 = sshll.u32 1, 14
  %s9 = sxor.u32 4294967295, %s8
  %s12 = sshll.u32 3, 24
  %s13 = sxor.u32 4294967295, %s12
  %s14 = sand.u32 0, %s13
  %s16 = sor.u32 %s14, 0
  %19 = dma.general %s0, 512, %s2, [#allocation2], [#allocation3], [#allocation4], %s16, 0
  %s20 = scalar_lea.hbm %s2, 512
  %s21 = scalar_lea.sflag [#allocation2], 1
  %s23 = sshll.u32 1, 14
  %s24 = sxor.u32 4294967295, %s23
  %s27 = sshll.u32 3, 24
  %s28 = sxor.u32 4294967295, %s27
  %s29 = sand.u32 0, %s28
  %s31 = sor.u32 %s29, 0
  %34 = dma.general %s1, 256, %s20, %s21, [#allocation5], [#allocation6], %s31, 0
  %s35 = smul.u32 2, 1
  %s36 = smul.u32 %s35, 16
  %s37 = sshll.u32 %s36, 4
  %38 = dma.done [#allocation2], %s37
  %s39 = smul.u32 %s35, 8
  %s40 = sshll.u32 %s39, 4
  %41 = dma.done %s21, %s40
  %42 = vsyncmov [#allocation2]
  %s43 = vpop.sfrf %42
  %p44 = scmp.eq.s32.totalorder %s43, 0
  %p45 = pneg %p44
  %47 = shalt.err (%p45)
  %s48 = scalar_lea.sflag [#allocation2], 1
  %49 = vsyncmov %s48
  %s50 = vpop.sfrf %49
  %p51 = scmp.eq.s32.totalorder %s50, 0
  %p52 = pneg %p51
  %54 = shalt.err (%p52)

</llo_original>
